<compile_context>
chip_gen: v6e
topology: v6e:2x2x1
jax: 0.10.0
libtpu: 0.0.40
codegen_flags: <defaults>
</compile_context>

<pallas_src>
import jax
import jax.numpy as jnp
from jax.experimental import pallas as pl
from jax.experimental.pallas import tpu as pltpu


def _round_up(x, m):
    return (x + m - 1) // m * m


def head_kernel(x_ref, w1_ref, b1_ref, w2_ref, b2_ref, o_ref):
    # Fused MLP head. Matmuls run on the MXU in bf16 with f32 accumulation;
    # bias + ReLU epilogue stays in f32 (VPU-friendly on all generations).
    h = jnp.dot(x_ref[...], w1_ref[...], preferred_element_type=jnp.float32)
    h = jnp.maximum(h + b1_ref[...], 0.0)          # f32 bias + ReLU
    # Dropout (eval mode) = identity
    out = jnp.dot(h.astype(w2_ref.dtype), w2_ref[...],
                  preferred_element_type=jnp.float32) + b2_ref[...]
    o_ref[...] = out.astype(o_ref.dtype)


def head_module_forward(x, w1, b1, w2, b2, *, tb=128):
    """x: [B, in_features] f32. w1: [in, hidden], b1: [hidden], w2: [hidden, out],
    b2: [out]. Returns [B, out_features] f32 (the .view(B, -1) is a no-op for 2-D)."""
    B, K = x.shape
    H = w1.shape[1]
    N = w2.shape[1]

    LANE = 128
    H_pad = _round_up(H, LANE)
    N_pad = _round_up(N, LANE)
    B_pad = _round_up(B, tb)

    # Zero-pad lane dims (padded columns/rows contribute exactly 0) and cast matmul
    # operands to bf16; biases stay f32 for the f32 epilogue.
    w1p = jnp.zeros((K, H_pad), jnp.bfloat16).at[:, :H].set(w1.astype(jnp.bfloat16))
    w2p = jnp.zeros((H_pad, N_pad), jnp.bfloat16).at[:H, :N].set(w2.astype(jnp.bfloat16))
    b1p = jnp.zeros((1, H_pad), jnp.float32).at[:, :H].set(b1.reshape(1, -1).astype(jnp.float32))
    b2p = jnp.zeros((1, N_pad), jnp.float32).at[:, :N].set(b2.reshape(1, -1).astype(jnp.float32))
    xp = jnp.zeros((B_pad, K), jnp.bfloat16).at[:B, :].set(x.astype(jnp.bfloat16))

    grid = (B_pad // tb,)

    # VMEM budget: double-buffered x/out tiles + resident weights + f32 intermediates,
    # with 2x headroom, capped at 64 MiB so the same config compiles on v7x.
    vmem_bytes = (2 * (tb * K * 2)            # x tile (bf16, double-buffered)
                  + 2 * (tb * N_pad * 4)      # out tile (f32, double-buffered)
                  + 2 * (K * H_pad * 2)       # w1 (bf16)
                  + 2 * (H_pad * N_pad * 2)   # w2 (bf16)
                  + 2 * (H_pad + N_pad) * 4   # biases (f32)
                  + tb * H_pad * 4)           # hidden intermediate (f32)
    vmem_limit = min(max(2 * vmem_bytes, 16 * 1024 * 1024), 64 * 1024 * 1024)

    cost = pl.CostEstimate(
        flops=2 * B_pad * (K * H_pad + H_pad * N_pad),
        transcendentals=0,
        bytes_accessed=(xp.size * 2 + w1p.size * 2 + w2p.size * 2
                        + b1p.size * 4 + b2p.size * 4 + B_pad * N_pad * 4),
    )

    y = pl.pallas_call(
        head_kernel,
        out_shape=jax.ShapeDtypeStruct((B_pad, N_pad), jnp.float32),
        grid_spec=pltpu.PrefetchScalarGridSpec(
            num_scalar_prefetch=0,
            grid=grid,
            in_specs=[
                pl.BlockSpec((tb, K), lambda i: (i, 0)),        # x: tiled over batch
                pl.BlockSpec((K, H_pad), lambda i: (0, 0)),     # w1: resident
                pl.BlockSpec((1, H_pad), lambda i: (0, 0)),     # b1: resident
                pl.BlockSpec((H_pad, N_pad), lambda i: (0, 0)), # w2: resident
                pl.BlockSpec((1, N_pad), lambda i: (0, 0)),     # b2: resident
            ],
            out_specs=pl.BlockSpec((tb, N_pad), lambda i: (i, 0)),
        ),
        compiler_params=pltpu.CompilerParams(
            dimension_semantics=("parallel",),
            vmem_limit_bytes=vmem_limit,
        ),
        cost_estimate=cost,
    )(xp, w1p, b1p, w2p, b2p)

    # Strip batch/lane padding, then x.view(x.shape[0], -1) (no-op for 2-D).
    return y[:B, :N].reshape(B, -1)


def init_params(key, in_features, out_features):
    hidden = in_features // 2
    k1, k2, k3, k4 = jax.random.split(key, 4)
    # Roughly matches nn.Linear's uniform(-1/sqrt(fan_in), 1/sqrt(fan_in)).
    bound1 = 1.0 / (in_features ** 0.5)
    bound2 = 1.0 / (hidden ** 0.5)
    # Stored pre-transposed [in, out]; weights in bf16 (matmul dtype), biases f32.
    w1 = jax.random.uniform(k1, (in_features, hidden), jnp.float32, -bound1, bound1).astype(jnp.bfloat16)
    b1 = jax.random.uniform(k2, (hidden,), jnp.float32, -bound1, bound1)
    w2 = jax.random.uniform(k3, (hidden, out_features), jnp.float32, -bound2, bound2).astype(jnp.bfloat16)
    b2 = jax.random.uniform(k4, (out_features,), jnp.float32, -bound2, bound2)
    return w1, b1, w2, b2


if __name__ == "__main__":
    key = jax.random.PRNGKey(0)
    kx, kp = jax.random.split(key)

    B = 2
    in_features = 32
    out_features = 8

    x = jax.random.normal(kx, (B, in_features), dtype=jnp.float32)
    w1, b1, w2, b2 = init_params(kp, in_features, out_features)

    y = head_module_forward(x, w1, b1, w2, b2)
    jax.block_until_ready(y)

    # Pure-JAX reference with the same bf16-matmul / f32-accumulate recipe
    # (dropout = identity in eval mode).
    xb = x.astype(jnp.bfloat16)
    h_ref = jnp.maximum(
        jnp.dot(xb, w1, preferred_element_type=jnp.float32) + b1.reshape(1, -1), 0.0)
    y_ref = (jnp.dot(h_ref.astype(jnp.bfloat16), w2, preferred_element_type=jnp.float32)
             + b2.reshape(1, -1)).reshape(B, -1)
    assert y.shape == (B, out_features), f"bad shape {y.shape}"
    assert jnp.allclose(y, y_ref, atol=1e-3, rtol=1e-3), "mismatch vs reference"

    print("KERNEL_OK")
</pallas_src>

<mosaic_0001>
module attributes {stable_mosaic.version = 11 : i64} {
  func.func @head_kernel(%arg0: i32, %arg1: memref<128x32xbf16, #tpu.memory_space<vmem>>, %arg2: memref<32x128xbf16, #tpu.memory_space<vmem>>, %arg3: memref<1x128xf32, #tpu.memory_space<vmem>>, %arg4: memref<128x128xbf16, #tpu.memory_space<vmem>>, %arg5: memref<1x128xf32, #tpu.memory_space<vmem>>, %arg6: memref<128x128xf32, #tpu.memory_space<vmem>>) attributes {dimension_semantics = [#tpu.dimension_semantics<parallel>], iteration_bounds = array<i64: 1>, scalar_prefetch = 0 : i64, scratch_operands = 0 : i64, tpu.core_type = #tpu.core_type<tc>, window_params = [{transform_indices = @transform_0, window_bounds = array<i64: 128, 32>}, {pipeline_mode = #tpu.pipeline_mode<synchronous>, transform_indices = @transform_1, window_bounds = array<i64: 32, 128>}, {pipeline_mode = #tpu.pipeline_mode<synchronous>, transform_indices = @transform_2, window_bounds = array<i64: 1, 128>}, {pipeline_mode = #tpu.pipeline_mode<synchronous>, transform_indices = @transform_3, window_bounds = array<i64: 128, 128>}, {pipeline_mode = #tpu.pipeline_mode<synchronous>, transform_indices = @transform_4, window_bounds = array<i64: 1, 128>}, {transform_indices = @transform_5, window_bounds = array<i64: 128, 128>}]} {
    %c0 = arith.constant 0 : index
    %c0_0 = arith.constant 0 : index
    %0 = vector.load %arg1[%c0, %c0_0] : memref<128x32xbf16, #tpu.memory_space<vmem>>, vector<128x32xbf16>
    %c0_1 = arith.constant 0 : index
    %c0_2 = arith.constant 0 : index
    %1 = vector.load %arg2[%c0_1, %c0_2] : memref<32x128xbf16, #tpu.memory_space<vmem>>, vector<32x128xbf16>
    %cst = arith.constant dense<0.000000e+00> : vector<128x128xf32>
    %2 = tpu.matmul %0, %1, %cst {dimension_numbers = #tpu.dot_dimension_numbers<[1], [0], [0], [1], [0, 0, 1, 1], [], []>} : vector<128x32xbf16>, vector<32x128xbf16>, vector<128x128xf32> -> vector<128x128xf32>
    %c0_3 = arith.constant 0 : index
    %c0_4 = arith.constant 0 : index
    %3 = vector.load %arg3[%c0_3, %c0_4] : memref<1x128xf32, #tpu.memory_space<vmem>>, vector<1x128xf32>
    %4 = vector.broadcast %3 : vector<1x128xf32> to vector<128x128xf32>
    %5 = arith.addf %2, %4 : vector<128x128xf32>
    %cst_5 = arith.constant 0.000000e+00 : f32
    %6 = vector.broadcast %cst_5 : f32 to vector<128x128xf32>
    %7 = arith.maximumf %5, %6 : vector<128x128xf32>
    %8 = arith.truncf %7 : vector<128x128xf32> to vector<128x128xbf16>
    %c0_6 = arith.constant 0 : index
    %c0_7 = arith.constant 0 : index
    %9 = vector.load %arg4[%c0_6, %c0_7] : memref<128x128xbf16, #tpu.memory_space<vmem>>, vector<128x128xbf16>
    %cst_8 = arith.constant dense<0.000000e+00> : vector<128x128xf32>
    %10 = tpu.matmul %8, %9, %cst_8 {dimension_numbers = #tpu.dot_dimension_numbers<[1], [0], [0], [1], [0, 0, 1, 1], [], []>} : vector<128x128xbf16>, vector<128x128xbf16>, vector<128x128xf32> -> vector<128x128xf32>
    %c0_9 = arith.constant 0 : index
    %c0_10 = arith.constant 0 : index
    %11 = vector.load %arg5[%c0_9, %c0_10] : memref<1x128xf32, #tpu.memory_space<vmem>>, vector<1x128xf32>
    %12 = vector.broadcast %11 : vector<1x128xf32> to vector<128x128xf32>
    %13 = arith.addf %10, %12 : vector<128x128xf32>
    %c0_11 = arith.constant 0 : index
    %c0_12 = arith.constant 0 : index
    %14 = vector.load %arg6[%c0_11, %c0_12] : memref<128x128xf32, #tpu.memory_space<vmem>>, vector<128x128xf32>
    tpu.vector_store %arg6[%c0_11, %c0_12], %13 {strides = array<i32>} : memref<128x128xf32, #tpu.memory_space<vmem>>, vector<128x128xf32>,
    return
  }
  func.func @transform_0(%arg0: i32) -> (i32, i32) {
    %c0_i32 = arith.constant 0 : i32
    %c0_i32_0 = arith.constant 0 : i32
    return %arg0, %c0_i32 : i32, i32
  }
  func.func @transform_1(%arg0: i32) -> (i32, i32) {
    %c0_i32 = arith.constant 0 : i32
    %c0_i32_0 = arith.constant 0 : i32
    %c0_i32_1 = arith.constant 0 : i32
    return %c0_i32, %c0_i32_0 : i32, i32
  }
  func.func @transform_2(%arg0: i32) -> (i32, i32) {
    %c0_i32 = arith.constant 0 : i32
    %c0_i32_0 = arith.constant 0 : i32
    %c0_i32_1 = arith.constant 0 : i32
    return %c0_i32, %c0_i32_0 : i32, i32
  }
  func.func @transform_3(%arg0: i32) -> (i32, i32) {
    %c0_i32 = arith.constant 0 : i32
    %c0_i32_0 = arith.constant 0 : i32
    %c0_i32_1 = arith.constant 0 : i32
    return %c0_i32, %c0_i32_0 : i32, i32
  }
  func.func @transform_4(%arg0: i32) -> (i32, i32) {
    %c0_i32 = arith.constant 0 : i32
    %c0_i32_0 = arith.constant 0 : i32
    %c0_i32_1 = arith.constant 0 : i32
    return %c0_i32, %c0_i32_0 : i32, i32
  }
  func.func @transform_5(%arg0: i32) -> (i32, i32) {
    %c0_i32 = arith.constant 0 : i32
    %c0_i32_0 = arith.constant 0 : i32
    return %arg0, %c0_i32 : i32, i32
  }
}

</mosaic_0001>

<llo_original>
// kernel: tpu_custom_call.1
$region0: #{tpu_custom_call.1}
  #allocation0 [shape = 'u32[]', space=smem, size = 0x4, offset = 0x4, fixed_abs, tag = 'smem constant byte address 0x4 - core index']
  #allocation1 [shape = 'u32[144,128]{1,0:T(1,128)}', space=vmem, size = 0x12000, scoped, tag = 'internal scratch']
  %s0 = inlined_call_operand.vmem [shape: bf16[128,32], index: 0, kind: input, shape index: {}]
  %s1 = inlined_call_operand.vmem [shape: bf16[32,128], index: 1, kind: input, shape index: {}]
  %s2 = inlined_call_operand.vmem [shape: f32[1,128], index: 2, kind: input, shape index: {}]
  %s3 = inlined_call_operand.vmem [shape: bf16[128,128], index: 3, kind: input, shape index: {}]
  %s4 = inlined_call_operand.vmem [shape: f32[1,128], index: 4, kind: input, shape index: {}]
  %s5 = inlined_call_operand.hbm [shape: f32[128,128], index: 5, kind: output, shape index: {}]
  %s6 = sld [smem:[#allocation0]]
  $region30: #{tpu_custom_call.1} parent=0
    _
  %s8 = ssub.s32 1, %s6
  %s9 = scalar_select 0, %s8, %s6
  $region1: #{tpu_custom_call.1} parent=0
    #allocation2 [shape = 'u8[65536]{0}', space=vmem, size = 0x10000, scoped, tag = 'output window, operand 0, single buffered']
    #allocation3 [shape = 's32[1]{0}', space=sflag, size = 0x4, scoped, tag = 'scoped memory for tpu_custom_call.1']
    %10 = vsyncpa [#allocation3], 0
    // Predicated region
    $region2: #{tpu_custom_call.1} parent=1 // pred_check
      _
    $region3: #{tpu_custom_call.1} parent=1 // pred_check_branch
      %12 = sbr.rel (0) target = $region5
    $region4: #{tpu_custom_call.1} parent=1 // pred_region
      _
    $region5: #{tpu_custom_call.1} parent=1 // pred_fallthru
      _
    // Predicated region
    $region6: #{tpu_custom_call.1} parent=1 // pred_check
      _
    $region7: #{tpu_custom_call.1} parent=1 // pred_check_branch
      %14 = sbr.rel (0) target = $region9
    $region8: #{tpu_custom_call.1} parent=1 // pred_region
      _
    $region9: #{tpu_custom_call.1} parent=1 // pred_fallthru
      _
    // Predicated region
    $region10: #{tpu_custom_call.1} parent=1 // pred_check
      _
    $region11: #{tpu_custom_call.1} parent=1 // pred_check_branch
      %16 = sbr.rel (0) target = $region13
    $region12: #{tpu_custom_call.1} parent=1 // pred_region
      _
    $region13: #{tpu_custom_call.1} parent=1 // pred_fallthru
      _
    // Predicated region
    $region14: #{tpu_custom_call.1} parent=1 // pred_check
      _
    $region15: #{tpu_custom_call.1} parent=1 // pred_check_branch
      %18 = sbr.rel (0) target = $region17
    $region16: #{tpu_custom_call.1} parent=1 // pred_region
      _
    $region17: #{tpu_custom_call.1} parent=1 // pred_fallthru
      _
    // Predicated region
    $region18: #{tpu_custom_call.1} parent=1 // pred_check
      _
    $region19: #{tpu_custom_call.1} parent=1 // pred_check_branch
      %20 = sbr.rel (0) target = $region21
    $region20: #{tpu_custom_call.1} parent=1 // pred_region
      _
    $region21: #{tpu_custom_call.1} parent=1 // pred_fallthru
      _
    %v22 = vld [vmem:[%s0] sm:$0xf]
    %v23 = vld [vmem:[%s0 + $0x4] sm:$0xf]
    %v24 = vld [vmem:[%s0 + $0x8] sm:$0xf]
    %v25 = vld [vmem:[%s0 + $0xc] sm:$0xf]
    %v26 = vld [vmem:[%s0 + $0x10] sm:$0xf]
    %v27 = vld [vmem:[%s0 + $0x14] sm:$0xf]
    %v28 = vld [vmem:[%s0 + $0x18] sm:$0xf]
    %v29 = vld [vmem:[%s0 + $0x1c] sm:$0xf]
    %v30 = vld [vmem:[%s0 + $0x20] sm:$0xf]
    %v31 = vld [vmem:[%s0 + $0x24] sm:$0xf]
    %v32 = vld [vmem:[%s0 + $0x28] sm:$0xf]
    %v33 = vld [vmem:[%s0 + $0x2c] sm:$0xf]
    %v34 = vld [vmem:[%s0 + $0x30] sm:$0xf]
    %v35 = vld [vmem:[%s0 + $0x34] sm:$0xf]
    %v36 = vld [vmem:[%s0 + $0x38] sm:$0xf]
    %v37 = vld [vmem:[%s0 + $0x3c] sm:$0xf]
    %v38 = vld [vmem:[%s1] sm:$0xf]
    %v39 = vld [vmem:[%s1 + $0x4] sm:$0xf]
    %v40 = vld [vmem:[%s1 + $0x8] sm:$0xf]
    %v41 = vld [vmem:[%s1 + $0xc] sm:$0xf]
    %v42 = vld [vmem:[%s2] sm:$0x1]
    %v44 = vlaneseq
    %v45 = vshrl.u32 %v44, 7
    %v46 = vsub.s32 0, %v45
    %v47 = vrot.slane %v42, %v46
    %v65 = vunpack.c.l.b16 %v22
    %v66 = vunpack.c.l.b16 %v23
    %v67 = vunpack.c.l.b16 %v24
    %v68 = vunpack.c.l.b16 %v25
    %v69 = vunpack.c.l.b16 %v26
    %v70 = vunpack.c.l.b16 %v27
    %v71 = vunpack.c.l.b16 %v28
    %v72 = vunpack.c.l.b16 %v29
    %v73 = vunpack.c.l.b16 %v30
    %v74 = vunpack.c.l.b16 %v31
    %v75 = vunpack.c.l.b16 %v32
    %v76 = vunpack.c.l.b16 %v33
    %v77 = vunpack.c.l.b16 %v34
    %v78 = vunpack.c.l.b16 %v35
    %v79 = vunpack.c.l.b16 %v36
    %v80 = vunpack.c.l.b16 %v37
    %v81 = vpack.c.b16 %v66, %v65
    %v82 = vpack.c.b16 %v68, %v67
    %v83 = vpack.c.b16 %v70, %v69
    %v84 = vpack.c.b16 %v72, %v71
    %v85 = vpack.c.b16 %v74, %v73
    %v86 = vpack.c.b16 %v76, %v75
    %v87 = vpack.c.b16 %v78, %v77
    %v88 = vpack.c.b16 %v80, %v79
    %v93 = vunpack.c.l.b16 %v38
    %v94 = vunpack.c.l.b16 %v39
    %v95 = vunpack.c.l.b16 %v40
    %v96 = vunpack.c.l.b16 %v41
    %v97 = vpack.c.b16 %v94, %v93
    %v98 = vpack.c.b16 %v96, %v95
    %vm101 = vcmask 261120
    %v103 = vsel %vm101, %v81, 0
    %v106 = vsel %vm101, %v82, 0
    %v109 = vsel %vm101, %v83, 0
    %v112 = vsel %vm101, %v84, 0
    %v115 = vsel %vm101, %v85, 0
    %v118 = vsel %vm101, %v86, 0
    %v121 = vsel %vm101, %v87, 0
    %v124 = vsel %vm101, %v88, 0
    %126 = vmatprep.subr.bf16.mxu0 0
    %127 = vmatpush1.bf16.msra.mxu0 0
    %128 = vmatprep.subr.bf16.mxu0 0
    %129 = vmatpush1.bf16.msra.mxu0 0
    %130 = vmatprep.subr.bf16.mxu0 0
    %131 = vmatpush1.bf16.msra.mxu0 0
    %132 = vmatprep.subr.bf16.mxu0 0
    %133 = vmatpush1.bf16.msra.mxu0 0
    %134 = vmatprep.subr.bf16.mxu0 0
    %135 = vmatpush1.bf16.msra.mxu0 0
    %136 = vmatprep.subr.bf16.mxu0 0
    %137 = vmatpush1.bf16.msra.mxu0 0
    %138 = vmatprep.subr.bf16.mxu0 0
    %139 = vmatpush1.bf16.msra.mxu0 %v98
    %140 = vmatprep.subr.bf16.mxu0 0
    %141 = vmatpush1.bf16.msra.mxu0 %v97
    %142 = vmatprep.subr.bf16.mxu0 0
    %143 = vmatpush2.bf16.msra.mxu0 0
    %144 = vmatprep.subr.bf16.mxu0 0
    %145 = vmatpush2.bf16.msra.mxu0 0
    %146 = vmatprep.subr.bf16.mxu0 0
    %147 = vmatpush2.bf16.msra.mxu0 0
    %148 = vmatprep.subr.bf16.mxu0 0
    %149 = vmatpush2.bf16.msra.mxu0 0
    %150 = vmatprep.subr.bf16.mxu0 0
    %151 = vmatpush2.bf16.msra.mxu0 0
    %152 = vmatprep.subr.bf16.mxu0 0
    %153 = vmatpush2.bf16.msra.mxu0 0
    %154 = vmatprep.subr.bf16.mxu0 0
    %155 = vmatpush2.bf16.msra.mxu0 0
    %156 = vmatprep.subr.bf16.mxu0 0
    %157 = vmatpush2.bf16.msra.mxu0 0
    %158 = vmatprep.mubr.bf16.mxu0 0
    %159 = vmatmul.mubr.bf16.gmra.mxu0 %v103
    %v160 = vpop.f32.mrf.mxu0
    %v161 = vadd.f32 %v47, %v160
    %v162 = vpop.f32.mrf.mxu0
    %v163 = vpop.f32.mrf.mxu0
    %v164 = vadd.f32 %v47, %v163
    %v165 = vpop.f32.mrf.mxu0
    %166 = vmatprep.mubr.bf16.mxu0 0
    %167 = vmatmul.mubr.bf16.gmra.mxu0 %v106
    %v168 = vpop.f32.mrf.mxu0
    %v169 = vadd.f32 %v47, %v168
    %v170 = vpop.f32.mrf.mxu0
    %v171 = vpop.f32.mrf.mxu0
    %v172 = vadd.f32 %v47, %v171
    %v173 = vpop.f32.mrf.mxu0
    %174 = vmatprep.mubr.bf16.mxu0 0
    %175 = vmatmul.mubr.bf16.gmra.mxu0 %v109
    %v176 = vpop.f32.mrf.mxu0
    %v177 = vadd.f32 %v47, %v176
    %v178 = vpop.f32.mrf.mxu0
    %v179 = vpop.f32.mrf.mxu0
    %v180 = vadd.f32 %v47, %v179
    %v181 = vpop.f32.mrf.mxu0
    %182 = vmatprep.mubr.bf16.mxu0 0
    %183 = vmatmul.mubr.bf16.gmra.mxu0 %v112
    %v184 = vpop.f32.mrf.mxu0
    %v185 = vadd.f32 %v47, %v184
    %v186 = vpop.f32.mrf.mxu0
    %v187 = vpop.f32.mrf.mxu0
    %v188 = vadd.f32 %v47, %v187
    %v189 = vpop.f32.mrf.mxu0
    %190 = vmatprep.mubr.bf16.mxu0 0
    %191 = vmatmul.mubr.bf16.gmra.mxu0 %v115
    %v192 = vpop.f32.mrf.mxu0
    %v193 = vadd.f32 %v47, %v192
    %v194 = vpop.f32.mrf.mxu0
    %v195 = vpop.f32.mrf.mxu0
    %v196 = vadd.f32 %v47, %v195
    %v197 = vpop.f32.mrf.mxu0
    %198 = vmatprep.mubr.bf16.mxu0 0
    %199 = vmatmul.mubr.bf16.gmra.mxu0 %v118
    %v200 = vpop.f32.mrf.mxu0
    %v201 = vadd.f32 %v47, %v200
    %v202 = vpop.f32.mrf.mxu0
    %v203 = vpop.f32.mrf.mxu0
    %v204 = vadd.f32 %v47, %v203
    %v205 = vpop.f32.mrf.mxu0
    %206 = vmatprep.mubr.bf16.mxu0 0
    %207 = vmatmul.mubr.bf16.gmra.mxu0 %v121
    %v208 = vpop.f32.mrf.mxu0
    %v209 = vadd.f32 %v47, %v208
    %v210 = vpop.f32.mrf.mxu0
    %v211 = vpop.f32.mrf.mxu0
    %v212 = vadd.f32 %v47, %v211
    %v213 = vpop.f32.mrf.mxu0
    %214 = vmatprep.mubr.bf16.mxu0 0
    %215 = vmatmul.mubr.bf16.gmra.mxu0 %v124
    %v216 = vpop.f32.mrf.mxu0
    %v217 = vadd.f32 %v47, %v216
    %v218 = vpop.f32.mrf.mxu0
    %v219 = vpop.f32.mrf.mxu0
    %v220 = vadd.f32 %v47, %v219
    %v221 = vpop.f32.mrf.mxu0
    %222 = vdwg.mxu0
    %v223 = vmax.f32 %v161, 0.0
    %v224 = vmax.f32 %v164, 0.0
    %v225 = vmax.f32 %v169, 0.0
    %v226 = vmax.f32 %v172, 0.0
    %v227 = vmax.f32 %v177, 0.0
    %v228 = vmax.f32 %v180, 0.0
    %v229 = vmax.f32 %v185, 0.0
    %v230 = vmax.f32 %v188, 0.0
    %v231 = vmax.f32 %v193, 0.0
    %v232 = vmax.f32 %v196, 0.0
    %v233 = vmax.f32 %v201, 0.0
    %v234 = vmax.f32 %v204, 0.0
    %v235 = vmax.f32 %v209, 0.0
    %v236 = vmax.f32 %v212, 0.0
    %v237 = vmax.f32 %v217, 0.0
    %v238 = vmax.f32 %v220, 0.0
    %v239 = vpack.c.bf16 %v224, %v223
    %v240 = vpack.c.bf16 %v226, %v225
    %v241 = vpack.c.bf16 %v228, %v227
    %v242 = vpack.c.bf16 %v230, %v229
    %v243 = vpack.c.bf16 %v232, %v231
    %v244 = vpack.c.bf16 %v234, %v233
    %v245 = vpack.c.bf16 %v236, %v235
    %v246 = vpack.c.bf16 %v238, %v237
    %v247 = vld [vmem:[%s3] sm:$0xf]
    %v248 = vld [vmem:[%s3 + $0x4] sm:$0xf]
    %v249 = vld [vmem:[%s3 + $0x8] sm:$0xf]
    %v250 = vld [vmem:[%s3 + $0xc] sm:$0xf]
    %v251 = vld [vmem:[%s3 + $0x10] sm:$0xf]
    %v252 = vld [vmem:[%s3 + $0x14] sm:$0xf]
    %v253 = vld [vmem:[%s3 + $0x18] sm:$0xf]
    %v254 = vld [vmem:[%s3 + $0x1c] sm:$0xf]
    %v255 = vld [vmem:[%s3 + $0x20] sm:$0xf]
    %v256 = vld [vmem:[%s3 + $0x24] sm:$0xf]
    %v257 = vld [vmem:[%s3 + $0x28] sm:$0xf]
    %v258 = vld [vmem:[%s3 + $0x2c] sm:$0xf]
    %v259 = vld [vmem:[%s3 + $0x30] sm:$0xf]
    %v260 = vld [vmem:[%s3 + $0x34] sm:$0xf]
    %v261 = vld [vmem:[%s3 + $0x38] sm:$0xf]
    %v262 = vld [vmem:[%s3 + $0x3c] sm:$0xf]
    %v263 = vld [vmem:[%s4] sm:$0x1]
    %v265 = vlaneseq
    %v266 = vshrl.u32 %v265, 7
    %v267 = vsub.s32 0, %v266
    %v268 = vrot.slane %v263, %v267
    %v286 = vunpack.c.l.b16 %v247
    %v287 = vunpack.c.l.b16 %v248
    %v288 = vunpack.c.l.b16 %v249
    %v289 = vunpack.c.l.b16 %v250
    %v290 = vunpack.c.l.b16 %v251
    %v291 = vunpack.c.l.b16 %v252
    %v292 = vunpack.c.l.b16 %v253
    %v293 = vunpack.c.l.b16 %v254
    %v294 = vunpack.c.l.b16 %v255
    %v295 = vunpack.c.l.b16 %v256
    %v296 = vunpack.c.l.b16 %v257
    %v297 = vunpack.c.l.b16 %v258
    %v298 = vunpack.c.l.b16 %v259
    %v299 = vunpack.c.l.b16 %v260
    %v300 = vunpack.c.l.b16 %v261
    %v301 = vunpack.c.l.b16 %v262
    %v302 = vpack.c.b16 %v287, %v286
    %v303 = vpack.c.b16 %v289, %v288
    %v304 = vpack.c.b16 %v291, %v290
    %v305 = vpack.c.b16 %v293, %v292
    %v306 = vpack.c.b16 %v295, %v294
    %v307 = vpack.c.b16 %v297, %v296
    %v308 = vpack.c.b16 %v299, %v298
    %v309 = vpack.c.b16 %v301, %v300
    %318 = vmatprep.subr.bf16.mxu0 0
    %319 = vmatpush1.bf16.msra.mxu0 %v309
    %320 = vmatprep.subr.bf16.mxu0 0
    %321 = vmatpush1.bf16.msra.mxu0 %v308
    %322 = vmatprep.subr.bf16.mxu0 0
    %323 = vmatpush1.bf16.msra.mxu0 %v307
    %324 = vmatprep.subr.bf16.mxu0 0
    %325 = vmatpush1.bf16.msra.mxu0 %v306
    %326 = vmatprep.subr.bf16.mxu0 0
    %327 = vmatpush1.bf16.msra.mxu0 %v305
    %328 = vmatprep.subr.bf16.mxu0 0
    %329 = vmatpush1.bf16.msra.mxu0 %v304
    %330 = vmatprep.subr.bf16.mxu0 0
    %331 = vmatpush1.bf16.msra.mxu0 %v303
    %332 = vmatprep.subr.bf16.mxu0 0
    %333 = vmatpush1.bf16.msra.mxu0 %v302
    %334 = vmatprep.subr.bf16.mxu0 0
    %335 = vmatpush2.bf16.msra.mxu0 0
    %336 = vmatprep.subr.bf16.mxu0 0
    %337 = vmatpush2.bf16.msra.mxu0 0
    %338 = vmatprep.subr.bf16.mxu0 0
    %339 = vmatpush2.bf16.msra.mxu0 0
    %340 = vmatprep.subr.bf16.mxu0 0
    %341 = vmatpush2.bf16.msra.mxu0 0
    %342 = vmatprep.subr.bf16.mxu0 0
    %343 = vmatpush2.bf16.msra.mxu0 0
    %344 = vmatprep.subr.bf16.mxu0 0
    %345 = vmatpush2.bf16.msra.mxu0 0
    %346 = vmatprep.subr.bf16.mxu0 0
    %347 = vmatpush2.bf16.msra.mxu0 0
    %348 = vmatprep.subr.bf16.mxu0 0
    %349 = vmatpush2.bf16.msra.mxu0 0
    %350 = vmatprep.mubr.bf16.mxu0 0
    %351 = vmatmul.mubr.bf16.gmra.mxu0 %v239
    %v352 = vpop.f32.mrf.mxu0
    %v353 = vadd.f32 %v268, %v352
    %v354 = vpop.f32.mrf.mxu0
    %v355 = vpop.f32.mrf.mxu0
    %v356 = vadd.f32 %v268, %v355
    %v357 = vpop.f32.mrf.mxu0
    %358 = vmatprep.mubr.bf16.mxu0 0
    %359 = vmatmul.mubr.bf16.gmra.mxu0 %v240
    %v360 = vpop.f32.mrf.mxu0
    %v361 = vadd.f32 %v268, %v360
    %v362 = vpop.f32.mrf.mxu0
    %v363 = vpop.f32.mrf.mxu0
    %v364 = vadd.f32 %v268, %v363
    %v365 = vpop.f32.mrf.mxu0
    %366 = vmatprep.mubr.bf16.mxu0 0
    %367 = vmatmul.mubr.bf16.gmra.mxu0 %v241
    %v368 = vpop.f32.mrf.mxu0
    %v369 = vadd.f32 %v268, %v368
    %v370 = vpop.f32.mrf.mxu0
    %v371 = vpop.f32.mrf.mxu0
    %v372 = vadd.f32 %v268, %v371
    %v373 = vpop.f32.mrf.mxu0
    %374 = vmatprep.mubr.bf16.mxu0 0
    %375 = vmatmul.mubr.bf16.gmra.mxu0 %v242
    %v376 = vpop.f32.mrf.mxu0
    %v377 = vadd.f32 %v268, %v376
    %v378 = vpop.f32.mrf.mxu0
    %v379 = vpop.f32.mrf.mxu0
    %v380 = vadd.f32 %v268, %v379
    %v381 = vpop.f32.mrf.mxu0
    %382 = vmatprep.mubr.bf16.mxu0 0
    %383 = vmatmul.mubr.bf16.gmra.mxu0 %v243
    %v384 = vpop.f32.mrf.mxu0
    %v385 = vadd.f32 %v268, %v384
    %v386 = vpop.f32.mrf.mxu0
    %v387 = vpop.f32.mrf.mxu0
    %v388 = vadd.f32 %v268, %v387
    %v389 = vpop.f32.mrf.mxu0
    %390 = vmatprep.mubr.bf16.mxu0 0
    %391 = vmatmul.mubr.bf16.gmra.mxu0 %v244
    %v392 = vpop.f32.mrf.mxu0
    %v393 = vadd.f32 %v268, %v392
    %v394 = vpop.f32.mrf.mxu0
    %v395 = vpop.f32.mrf.mxu0
    %v396 = vadd.f32 %v268, %v395
    %v397 = vpop.f32.mrf.mxu0
    %398 = vmatprep.mubr.bf16.mxu0 0
    %399 = vmatmul.mubr.bf16.gmra.mxu0 %v245
    %v400 = vpop.f32.mrf.mxu0
    %v401 = vadd.f32 %v268, %v400
    %v402 = vpop.f32.mrf.mxu0
    %v403 = vpop.f32.mrf.mxu0
    %v404 = vadd.f32 %v268, %v403
    %v405 = vpop.f32.mrf.mxu0
    %406 = vmatprep.mubr.bf16.mxu0 0
    %407 = vmatmul.mubr.bf16.gmra.mxu0 %v246
    %v408 = vpop.f32.mrf.mxu0
    %v409 = vadd.f32 %v268, %v408
    %v410 = vpop.f32.mrf.mxu0
    %v411 = vpop.f32.mrf.mxu0
    %v412 = vadd.f32 %v268, %v411
    %v413 = vpop.f32.mrf.mxu0
    %414 = vdwg.mxu0
    %415 = vst [vmem:[#allocation2] sm:$0xff] %v353
    %416 = vst [vmem:[#allocation2 + $0x8] sm:$0xff] %v356
    %417 = vst [vmem:[#allocation2 + $0x10] sm:$0xff] %v361
    %418 = vst [vmem:[#allocation2 + $0x18] sm:$0xff] %v364
    %419 = vst [vmem:[#allocation2 + $0x20] sm:$0xff] %v369
    %420 = vst [vmem:[#allocation2 + $0x28] sm:$0xff] %v372
    %421 = vst [vmem:[#allocation2 + $0x30] sm:$0xff] %v377
    %422 = vst [vmem:[#allocation2 + $0x38] sm:$0xff] %v380
    %423 = vst [vmem:[#allocation2 + $0x40] sm:$0xff] %v385
    %424 = vst [vmem:[#allocation2 + $0x48] sm:$0xff] %v388
    %425 = vst [vmem:[#allocation2 + $0x50] sm:$0xff] %v393
    %426 = vst [vmem:[#allocation2 + $0x58] sm:$0xff] %v396
    %427 = vst [vmem:[#allocation2 + $0x60] sm:$0xff] %v401
    %428 = vst [vmem:[#allocation2 + $0x68] sm:$0xff] %v404
    %429 = vst [vmem:[#allocation2 + $0x70] sm:$0xff] %v409
    %430 = vst [vmem:[#allocation2 + $0x78] sm:$0xff] %v412
    // Predicated region
    $region22: #{tpu_custom_call.1} parent=1 // pred_check
      _
    $region23: #{tpu_custom_call.1} parent=1 // pred_check_branch
      %432 = sbr.rel (0) target = $region25
    $region24: #{tpu_custom_call.1} parent=1 // pred_region
      %s434 = ssub.s32 2048, 2048
      %435 = vsyncadd [#allocation3], %s434
      %s436 = sshll.u32 [#allocation2], 4
      %s437 = int_to_ptr.vmem [resolvable:$true] %s436
      %442 = dma.vmem_to_hbm [thread:$0]  %s437, 2048, %s5, [#allocation3], 128, 128, 8
    $region25: #{tpu_custom_call.1} parent=1 // pred_fallthru
      _
    // Predicated region
    $region26: #{tpu_custom_call.1} parent=1 // pred_check
      _
    $region27: #{tpu_custom_call.1} parent=1 // pred_check_branch
      %444 = sbr.rel (0) target = $region29
    $region28: #{tpu_custom_call.1} parent=1 // pred_region
      %445 = dma.done [#allocation3], 2048
    $region29: #{tpu_custom_call.1} parent=1 // pred_fallthru
      _
    %446 = vsyncpa [#allocation3], 1

</llo_original>
